<compile_context>
chip_gen: v6e
topology: v6e:2x2x1
jax: 0.10.0
libtpu: 0.0.40
codegen_flags: <defaults>
</compile_context>

<pallas_src>
import jax
import jax.numpy as jnp
from jax.experimental import pallas as pl
from jax.experimental.pallas import tpu as pltpu


LANE = 128      # vreg lane width
SUBLANE = 8     # f32 sublane count


def _round_up(n: int, m: int) -> int:
    return ((n + m - 1) // m) * m


def _pad2(a, rows: int, cols: int):
    r, c = a.shape
    return jnp.pad(a, ((0, rows - r), (0, cols - c)))


def _mlp_kernel(x_ref, w1_ref, bias_ref, w2_ref, out_ref):
    """One batch tile: out = relu(x @ w1 + b1) @ w2 + b2 (f32 accumulation)."""
    hp = w1_ref.shape[1]
    cp = w2_ref.shape[1]

    bias = bias_ref[...]            # (2, L) f32, VMEM-resident across grid steps
    b1 = bias[0:1, :hp]             # (1, Hp)
    b2 = bias[1:2, :cp]             # (1, Cp)

    # fc1 on the MXU (bf16 x bf16 -> f32 accumulate), bias + ReLU on the VPU in f32.
    h = jnp.dot(x_ref[...], w1_ref[...], preferred_element_type=jnp.float32)
    h = jnp.maximum(h + b1, 0.0)

    # Deliberate bf16 cast of the activations for the second MXU pass.
    y = jnp.dot(h.astype(w2_ref.dtype), w2_ref[...],
                preferred_element_type=jnp.float32)
    out_ref[...] = (y + b2).astype(out_ref.dtype)


def two_layout_net_forward(x, w1, b1, w2, b2, *, block_b: int = 512,
                           use_bf16_matmul: bool = True):
    """Forward pass of TwoLayoutNet.

    x  : (B, input_size)        float32
    w1 : (input_size, hidden)   float32  (transposed vs. PyTorch nn.Linear weight)
    b1 : (1, hidden)            float32
    w2 : (hidden, num_classes)  float32  (transposed vs. PyTorch nn.Linear weight)
    b2 : (1, num_classes)       float32
    returns (B, num_classes)    float32
    """
    B, In = x.shape
    H = w1.shape[1]
    C = w2.shape[1]

    b1 = b1.reshape(1, H)
    b2 = b2.reshape(1, C)

    # --- host-side padding to lane/sublane-aligned shapes -------------------
    Inp = _round_up(In, LANE)
    Hp = _round_up(H, LANE)
    Cp = _round_up(C, LANE)

    TB = min(block_b, _round_up(B, SUBLANE))   # batch tile, multiple of 8
    Bp = _round_up(B, TB)
    n_b = Bp // TB

    mxu_dtype = jnp.bfloat16 if use_bf16_matmul else x.dtype

    x_p = _pad2(x, Bp, Inp).astype(mxu_dtype)
    w1_p = _pad2(w1, Inp, Hp).astype(mxu_dtype)
    w2_p = _pad2(w2, Hp, Cp).astype(mxu_dtype)

    # Pack both biases into one (2, L) f32 array (row 0 = b1, row 1 = b2).
    L = max(Hp, Cp)
    bias_p = jnp.concatenate([_pad2(b1, 1, L), _pad2(b2, 1, L)], axis=0)
    bias_p = bias_p.astype(jnp.float32)

    out_padded = pl.pallas_call(
        _mlp_kernel,
        out_shape=jax.ShapeDtypeStruct((Bp, Cp), jnp.float32),
        grid=(n_b,),
        in_specs=[
            pl.BlockSpec((TB, Inp), lambda i: (i, 0)),   # activations stream
            pl.BlockSpec((Inp, Hp), lambda i: (0, 0)),   # w1: weight-stationary
            pl.BlockSpec((2, L),    lambda i: (0, 0)),   # packed biases: stationary
            pl.BlockSpec((Hp, Cp),  lambda i: (0, 0)),   # w2: weight-stationary
        ],
        out_specs=pl.BlockSpec((TB, Cp), lambda i: (i, 0)),
        compiler_params=pltpu.CompilerParams(
            dimension_semantics=("parallel",),
        ),
    )(x_p, w1_p, bias_p, w2_p)

    # Strip the padding back off.
    return out_padded[:B, :C]


def _reference_f32(x, w1, b1, w2, b2):
    h = jnp.maximum(x @ w1 + b1, 0.0)
    return h @ w2 + b2


def _reference_bf16(x, w1, b1, w2, b2):
    """Mirrors the kernel's numerics (bf16 MXU operands, f32 accumulation)."""
    bf = jnp.bfloat16
    h = jnp.dot(x.astype(bf), w1.astype(bf), preferred_element_type=jnp.float32)
    h = jnp.maximum(h + b1, 0.0)
    y = jnp.dot(h.astype(bf), w2.astype(bf), preferred_element_type=jnp.float32)
    return y + b2


if __name__ == "__main__":
    # Small shapes consistent with the module: Linear(input_size, hidden) ->
    # ReLU -> Linear(hidden, num_classes).
    batch = 8
    input_size = 64
    hidden_size = 32
    num_classes = 16

    key = jax.random.PRNGKey(0)
    kx, kw1, kb1, kw2, kb2 = jax.random.split(key, 5)

    x = jax.random.normal(kx, (batch, input_size), dtype=jnp.float32)

    # Deterministic parameter init (mimicking nn.Linear's uniform fan-in init).
    bound1 = 1.0 / jnp.sqrt(input_size)
    w1 = jax.random.uniform(kw1, (input_size, hidden_size),
                            minval=-bound1, maxval=bound1, dtype=jnp.float32)
    b1 = jax.random.uniform(kb1, (1, hidden_size),
                            minval=-bound1, maxval=bound1, dtype=jnp.float32)

    bound2 = 1.0 / jnp.sqrt(hidden_size)
    w2 = jax.random.uniform(kw2, (hidden_size, num_classes),
                            minval=-bound2, maxval=bound2, dtype=jnp.float32)
    b2 = jax.random.uniform(kb2, (1, num_classes),
                            minval=-bound2, maxval=bound2, dtype=jnp.float32)

    out = two_layout_net_forward(x, w1, b1, w2, b2)
    out = jax.block_until_ready(out)
    assert out.shape == (batch, num_classes)

    # Tight check against a reference with matching (bf16-MXU, f32-accum) numerics.
    ref_bf16 = _reference_bf16(x, w1, b1, w2, b2)
    assert jnp.allclose(out, ref_bf16, atol=1e-4, rtol=1e-4)

    # Loose sanity check against the pure-f32 PyTorch-equivalent forward
    # (bf16 operand rounding is the only difference, a deliberate perf choice).
    ref_f32 = _reference_f32(x, w1, b1, w2, b2)
    assert jnp.allclose(out, ref_f32, atol=5e-2, rtol=5e-2)

    print("KERNEL_OK")
</pallas_src>

<mosaic_0001>
module attributes {stable_mosaic.version = 11 : i64} {
  func.func @_mlp_kernel(%arg0: i32, %arg1: memref<8x128xbf16, #tpu.memory_space<vmem>>, %arg2: memref<128x128xbf16, #tpu.memory_space<vmem>>, %arg3: memref<2x128xf32, #tpu.memory_space<vmem>>, %arg4: memref<128x128xbf16, #tpu.memory_space<vmem>>, %arg5: memref<8x128xf32, #tpu.memory_space<vmem>>) attributes {dimension_semantics = [#tpu.dimension_semantics<parallel>], iteration_bounds = array<i64: 1>, scalar_prefetch = 0 : i64, scratch_operands = 0 : i64, tpu.core_type = #tpu.core_type<tc>, window_params = [{transform_indices = @transform_0, window_bounds = array<i64: 8, 128>}, {pipeline_mode = #tpu.pipeline_mode<synchronous>, transform_indices = @transform_1, window_bounds = array<i64: 128, 128>}, {pipeline_mode = #tpu.pipeline_mode<synchronous>, transform_indices = @transform_2, window_bounds = array<i64: 2, 128>}, {pipeline_mode = #tpu.pipeline_mode<synchronous>, transform_indices = @transform_3, window_bounds = array<i64: 128, 128>}, {transform_indices = @transform_4, window_bounds = array<i64: 8, 128>}]} {
    %c0 = arith.constant 0 : index
    %c0_0 = arith.constant 0 : index
    %0 = vector.load %arg3[%c0, %c0_0] : memref<2x128xf32, #tpu.memory_space<vmem>>, vector<2x128xf32>
    %1 = vector.extract_strided_slice %0 {offsets = [0, 0], sizes = [1, 128], strides = [1, 1]} : vector<2x128xf32> to vector<1x128xf32>
    %2 = vector.extract_strided_slice %0 {offsets = [1, 0], sizes = [1, 128], strides = [1, 1]} : vector<2x128xf32> to vector<1x128xf32>
    %c0_1 = arith.constant 0 : index
    %c0_2 = arith.constant 0 : index
    %3 = vector.load %arg1[%c0_1, %c0_2] : memref<8x128xbf16, #tpu.memory_space<vmem>>, vector<8x128xbf16>
    %c0_3 = arith.constant 0 : index
    %c0_4 = arith.constant 0 : index
    %4 = vector.load %arg2[%c0_3, %c0_4] : memref<128x128xbf16, #tpu.memory_space<vmem>>, vector<128x128xbf16>
    %cst = arith.constant dense<0.000000e+00> : vector<8x128xf32>
    %5 = tpu.matmul %3, %4, %cst {dimension_numbers = #tpu.dot_dimension_numbers<[1], [0], [0], [1], [0, 0, 1, 1], [], []>} : vector<8x128xbf16>, vector<128x128xbf16>, vector<8x128xf32> -> vector<8x128xf32>
    %6 = vector.broadcast %1 : vector<1x128xf32> to vector<8x128xf32>
    %7 = arith.addf %5, %6 : vector<8x128xf32>
    %cst_5 = arith.constant 0.000000e+00 : f32
    %8 = vector.broadcast %cst_5 : f32 to vector<8x128xf32>
    %9 = arith.maximumf %7, %8 : vector<8x128xf32>
    %10 = arith.truncf %9 : vector<8x128xf32> to vector<8x128xbf16>
    %c0_6 = arith.constant 0 : index
    %c0_7 = arith.constant 0 : index
    %11 = vector.load %arg4[%c0_6, %c0_7] : memref<128x128xbf16, #tpu.memory_space<vmem>>, vector<128x128xbf16>
    %cst_8 = arith.constant dense<0.000000e+00> : vector<8x128xf32>
    %12 = tpu.matmul %10, %11, %cst_8 {dimension_numbers = #tpu.dot_dimension_numbers<[1], [0], [0], [1], [0, 0, 1, 1], [], []>} : vector<8x128xbf16>, vector<128x128xbf16>, vector<8x128xf32> -> vector<8x128xf32>
    %13 = vector.broadcast %2 : vector<1x128xf32> to vector<8x128xf32>
    %14 = arith.addf %12, %13 : vector<8x128xf32>
    %c0_9 = arith.constant 0 : index
    %c0_10 = arith.constant 0 : index
    %15 = vector.load %arg5[%c0_9, %c0_10] : memref<8x128xf32, #tpu.memory_space<vmem>>, vector<8x128xf32>
    tpu.vector_store %arg5[%c0_9, %c0_10], %14 {strides = array<i32>} : memref<8x128xf32, #tpu.memory_space<vmem>>, vector<8x128xf32>,
    return
  }
  func.func @transform_0(%arg0: i32) -> (i32, i32) {
    %c0_i32 = arith.constant 0 : i32
    %c0_i32_0 = arith.constant 0 : i32
    return %arg0, %c0_i32 : i32, i32
  }
  func.func @transform_1(%arg0: i32) -> (i32, i32) {
    %c0_i32 = arith.constant 0 : i32
    %c0_i32_0 = arith.constant 0 : i32
    %c0_i32_1 = arith.constant 0 : i32
    return %c0_i32, %c0_i32_0 : i32, i32
  }
  func.func @transform_2(%arg0: i32) -> (i32, i32) {
    %c0_i32 = arith.constant 0 : i32
    %c0_i32_0 = arith.constant 0 : i32
    %c0_i32_1 = arith.constant 0 : i32
    return %c0_i32, %c0_i32_0 : i32, i32
  }
  func.func @transform_3(%arg0: i32) -> (i32, i32) {
    %c0_i32 = arith.constant 0 : i32
    %c0_i32_0 = arith.constant 0 : i32
    %c0_i32_1 = arith.constant 0 : i32
    return %c0_i32, %c0_i32_0 : i32, i32
  }
  func.func @transform_4(%arg0: i32) -> (i32, i32) {
    %c0_i32 = arith.constant 0 : i32
    %c0_i32_0 = arith.constant 0 : i32
    return %arg0, %c0_i32 : i32, i32
  }
}

</mosaic_0001>

<llo_original>
// kernel: tpu_custom_call.1
$region0: #{tpu_custom_call.1}
  #allocation0 [shape = 'u32[]', space=smem, size = 0x4, offset = 0x4, fixed_abs, tag = 'smem constant byte address 0x4 - core index']
  #allocation1 [shape = 'u32[144,128]{1,0:T(1,128)}', space=vmem, size = 0x12000, scoped, tag = 'internal scratch']
  %s0 = inlined_call_operand.hbm [shape: bf16[8,128], index: 0, kind: input, shape index: {}]
  %s1 = inlined_call_operand.hbm [shape: bf16[128,128], index: 1, kind: input, shape index: {}]
  %s2 = inlined_call_operand.vmem [shape: f32[2,128], index: 2, kind: input, shape index: {}]
  %s3 = inlined_call_operand.hbm [shape: bf16[128,128], index: 3, kind: input, shape index: {}]
  %s4 = inlined_call_operand.hbm [shape: f32[8,128], index: 4, kind: output, shape index: {}]
  %s5 = sld [smem:[#allocation0]]
  $region38: #{tpu_custom_call.1} parent=0
    _
  %s7 = ssub.s32 1, %s5
  %s8 = scalar_select 0, %s7, %s5
  $region1: #{tpu_custom_call.1} parent=0
    #allocation2 [shape = 'u8[2048]{0}', space=vmem, size = 0x800, scoped, tag = 'input window, operand 0, single buffered']
    #allocation3 [shape = 's32[1]{0}', space=sflag, size = 0x4, scoped, tag = 'scoped memory for tpu_custom_call.1']
    #allocation4 [shape = 's32[1]{0}', space=sflag, size = 0x4, scoped, tag = 'scoped memory for tpu_custom_call.1']
    #allocation5 [shape = 'u8[32768]{0}', space=vmem, size = 0x8000, scoped, tag = 'input window, operand 1, single buffered']
    #allocation6 [shape = 's32[1]{0}', space=sflag, size = 0x4, scoped, tag = 'scoped memory for tpu_custom_call.1']
    #allocation7 [shape = 'u8[32768]{0}', space=vmem, size = 0x8000, scoped, tag = 'input window, operand 3, single buffered']
    #allocation8 [shape = 'u8[4096]{0}', space=vmem, size = 0x1000, scoped, tag = 'output window, operand 0, single buffered']
    %9 = vsyncpa [#allocation3], 0
    %10 = vsyncpa [#allocation6], 0
    %11 = vsyncpa [#allocation4], 0
    // Predicated region
    $region2: #{tpu_custom_call.1} parent=1 // pred_check
      _
    $region3: #{tpu_custom_call.1} parent=1 // pred_check_branch
      %13 = sbr.rel (0) target = $region5
    $region4: #{tpu_custom_call.1} parent=1 // pred_region
      %s15 = ssub.s32 64, 64
      %16 = vsyncadd [#allocation3], %s15
      %s18 = sshll.u32 [#allocation2], 4
      %s19 = int_to_ptr.vmem [resolvable:$true] %s18
      %21 = dma.hbm_to_vmem [thread:$0]  %s0, 64, %s19, [#allocation3]
    $region5: #{tpu_custom_call.1} parent=1 // pred_fallthru
      _
    // Predicated region
    $region6: #{tpu_custom_call.1} parent=1 // pred_check
      _
    $region7: #{tpu_custom_call.1} parent=1 // pred_check_branch
      %23 = sbr.rel (0) target = $region9
    $region8: #{tpu_custom_call.1} parent=1 // pred_region
      %s25 = ssub.s32 1024, 1024
      %26 = vsyncadd [#allocation6], %s25
      %s27 = sshll.u32 [#allocation5], 4
      %s28 = int_to_ptr.vmem [resolvable:$true] %s27
      %33 = dma.hbm_to_vmem [thread:$0]  %s1, 1024, %s28, [#allocation6], 64, 64, 4
    $region9: #{tpu_custom_call.1} parent=1 // pred_fallthru
      _
    // Predicated region
    $region10: #{tpu_custom_call.1} parent=1 // pred_check
      _
    $region11: #{tpu_custom_call.1} parent=1 // pred_check_branch
      %35 = sbr.rel (0) target = $region13
    $region12: #{tpu_custom_call.1} parent=1 // pred_region
      _
    $region13: #{tpu_custom_call.1} parent=1 // pred_fallthru
      _
    // Predicated region
    $region14: #{tpu_custom_call.1} parent=1 // pred_check
      _
    $region15: #{tpu_custom_call.1} parent=1 // pred_check_branch
      %37 = sbr.rel (0) target = $region17
    $region16: #{tpu_custom_call.1} parent=1 // pred_region
      %s39 = ssub.s32 1024, 1024
      %40 = vsyncadd [#allocation6], %s39
      %s41 = sshll.u32 [#allocation7], 4
      %s42 = int_to_ptr.vmem [resolvable:$true] %s41
      %47 = dma.hbm_to_vmem [thread:$0]  %s3, 1024, %s42, [#allocation6], 64, 64, 4
    $region17: #{tpu_custom_call.1} parent=1 // pred_fallthru
      _
    // Predicated region
    $region18: #{tpu_custom_call.1} parent=1 // pred_check
      _
    $region19: #{tpu_custom_call.1} parent=1 // pred_check_branch
      %49 = sbr.rel (0) target = $region21
    $region20: #{tpu_custom_call.1} parent=1 // pred_region
      %50 = dma.done [#allocation3], 64
    $region21: #{tpu_custom_call.1} parent=1 // pred_fallthru
      _
    // Predicated region
    $region22: #{tpu_custom_call.1} parent=1 // pred_check
      _
    $region23: #{tpu_custom_call.1} parent=1 // pred_check_branch
      %52 = sbr.rel (0) target = $region25
    $region24: #{tpu_custom_call.1} parent=1 // pred_region
      %53 = dma.done [#allocation6], 1024
    $region25: #{tpu_custom_call.1} parent=1 // pred_fallthru
      _
    // Predicated region
    $region26: #{tpu_custom_call.1} parent=1 // pred_check
      _
    $region27: #{tpu_custom_call.1} parent=1 // pred_check_branch
      %55 = sbr.rel (0) target = $region29
    $region28: #{tpu_custom_call.1} parent=1 // pred_region
      %56 = dma.done [#allocation6], 1024
    $region29: #{tpu_custom_call.1} parent=1 // pred_fallthru
      _
    %v58 = vld [vmem:[%s2] sm:$0x3]
    %v59 = vld [vmem:[#allocation2] sm:$0xf]
    %v60 = vld [vmem:[#allocation5] sm:$0xf]
    %v61 = vld [vmem:[#allocation5 + $0x4] sm:$0xf]
    %v62 = vld [vmem:[#allocation5 + $0x8] sm:$0xf]
    %v63 = vld [vmem:[#allocation5 + $0xc] sm:$0xf]
    %v64 = vld [vmem:[#allocation5 + $0x10] sm:$0xf]
    %v65 = vld [vmem:[#allocation5 + $0x14] sm:$0xf]
    %v66 = vld [vmem:[#allocation5 + $0x18] sm:$0xf]
    %v67 = vld [vmem:[#allocation5 + $0x1c] sm:$0xf]
    %v68 = vld [vmem:[#allocation5 + $0x20] sm:$0xf]
    %v69 = vld [vmem:[#allocation5 + $0x24] sm:$0xf]
    %v70 = vld [vmem:[#allocation5 + $0x28] sm:$0xf]
    %v71 = vld [vmem:[#allocation5 + $0x2c] sm:$0xf]
    %v72 = vld [vmem:[#allocation5 + $0x30] sm:$0xf]
    %v73 = vld [vmem:[#allocation5 + $0x34] sm:$0xf]
    %v74 = vld [vmem:[#allocation5 + $0x38] sm:$0xf]
    %v75 = vld [vmem:[#allocation5 + $0x3c] sm:$0xf]
    %v76 = vlaneseq
    %v77 = vshrl.u32 %v76, 7
    %v78 = vsub.s32 0, %v77
    %v79 = vrot.slane %v58, %v78
    %v96 = vunpack.c.l.b16 %v60
    %v97 = vunpack.c.l.b16 %v61
    %v98 = vunpack.c.l.b16 %v62
    %v99 = vunpack.c.l.b16 %v63
    %v100 = vunpack.c.l.b16 %v64
    %v101 = vunpack.c.l.b16 %v65
    %v102 = vunpack.c.l.b16 %v66
    %v103 = vunpack.c.l.b16 %v67
    %v104 = vunpack.c.l.b16 %v68
    %v105 = vunpack.c.l.b16 %v69
    %v106 = vunpack.c.l.b16 %v70
    %v107 = vunpack.c.l.b16 %v71
    %v108 = vunpack.c.l.b16 %v72
    %v109 = vunpack.c.l.b16 %v73
    %v110 = vunpack.c.l.b16 %v74
    %v111 = vunpack.c.l.b16 %v75
    %v112 = vpack.c.b16 %v97, %v96
    %v113 = vpack.c.b16 %v99, %v98
    %v114 = vpack.c.b16 %v101, %v100
    %v115 = vpack.c.b16 %v103, %v102
    %v116 = vpack.c.b16 %v105, %v104
    %v117 = vpack.c.b16 %v107, %v106
    %v118 = vpack.c.b16 %v109, %v108
    %v119 = vpack.c.b16 %v111, %v110
    %128 = vmatprep.subr.bf16.mxu0 0
    %129 = vmatpush1.bf16.msra.mxu0 %v119
    %130 = vmatprep.subr.bf16.mxu0 0
    %131 = vmatpush1.bf16.msra.mxu0 %v118
    %132 = vmatprep.subr.bf16.mxu0 0
    %133 = vmatpush1.bf16.msra.mxu0 %v117
    %134 = vmatprep.subr.bf16.mxu0 0
    %135 = vmatpush1.bf16.msra.mxu0 %v116
    %136 = vmatprep.subr.bf16.mxu0 0
    %137 = vmatpush1.bf16.msra.mxu0 %v115
    %138 = vmatprep.subr.bf16.mxu0 0
    %139 = vmatpush1.bf16.msra.mxu0 %v114
    %140 = vmatprep.subr.bf16.mxu0 0
    %141 = vmatpush1.bf16.msra.mxu0 %v113
    %142 = vmatprep.subr.bf16.mxu0 0
    %143 = vmatpush1.bf16.msra.mxu0 %v112
    %144 = vmatprep.subr.bf16.mxu0 0
    %145 = vmatpush2.bf16.msra.mxu0 0
    %146 = vmatprep.subr.bf16.mxu0 0
    %147 = vmatpush2.bf16.msra.mxu0 0
    %148 = vmatprep.subr.bf16.mxu0 0
    %149 = vmatpush2.bf16.msra.mxu0 0
    %150 = vmatprep.subr.bf16.mxu0 0
    %151 = vmatpush2.bf16.msra.mxu0 0
    %152 = vmatprep.subr.bf16.mxu0 0
    %153 = vmatpush2.bf16.msra.mxu0 0
    %154 = vmatprep.subr.bf16.mxu0 0
    %155 = vmatpush2.bf16.msra.mxu0 0
    %156 = vmatprep.subr.bf16.mxu0 0
    %157 = vmatpush2.bf16.msra.mxu0 0
    %158 = vmatprep.subr.bf16.mxu0 0
    %159 = vmatpush2.bf16.msra.mxu0 0
    %160 = vmatprep.mubr.bf16.mxu0 0
    %161 = vmatmul.mubr.bf16.gmra.mxu0 %v59
    %v162 = vpop.f32.mrf.mxu0
    %v163 = vadd.f32 %v79, %v162
    %v164 = vpop.f32.mrf.mxu0
    %v165 = vpop.f32.mrf.mxu0
    %v166 = vpop.f32.mrf.mxu0
    %167 = vdwg.mxu0
    %v168 = vmax.f32 %v163, 0.0
    %v169 = vpack.c.bf16 %v168, %v168
    %v170 = vld [vmem:[#allocation7] sm:$0xf]
    %v171 = vld [vmem:[#allocation7 + $0x4] sm:$0xf]
    %v172 = vld [vmem:[#allocation7 + $0x8] sm:$0xf]
    %v173 = vld [vmem:[#allocation7 + $0xc] sm:$0xf]
    %v174 = vld [vmem:[#allocation7 + $0x10] sm:$0xf]
    %v175 = vld [vmem:[#allocation7 + $0x14] sm:$0xf]
    %v176 = vld [vmem:[#allocation7 + $0x18] sm:$0xf]
    %v177 = vld [vmem:[#allocation7 + $0x1c] sm:$0xf]
    %v178 = vld [vmem:[#allocation7 + $0x20] sm:$0xf]
    %v179 = vld [vmem:[#allocation7 + $0x24] sm:$0xf]
    %v180 = vld [vmem:[#allocation7 + $0x28] sm:$0xf]
    %v181 = vld [vmem:[#allocation7 + $0x2c] sm:$0xf]
    %v182 = vld [vmem:[#allocation7 + $0x30] sm:$0xf]
    %v183 = vld [vmem:[#allocation7 + $0x34] sm:$0xf]
    %v184 = vld [vmem:[#allocation7 + $0x38] sm:$0xf]
    %v185 = vld [vmem:[#allocation7 + $0x3c] sm:$0xf]
    %v186 = vlaneseq
    %v187 = vshrl.u32 %v186, 7
    %v188 = vsub.s32 1, %v187
    %v189 = vrot.slane %v58, %v188
    %v206 = vunpack.c.l.b16 %v170
    %v207 = vunpack.c.l.b16 %v171
    %v208 = vunpack.c.l.b16 %v172
    %v209 = vunpack.c.l.b16 %v173
    %v210 = vunpack.c.l.b16 %v174
    %v211 = vunpack.c.l.b16 %v175
    %v212 = vunpack.c.l.b16 %v176
    %v213 = vunpack.c.l.b16 %v177
    %v214 = vunpack.c.l.b16 %v178
    %v215 = vunpack.c.l.b16 %v179
    %v216 = vunpack.c.l.b16 %v180
    %v217 = vunpack.c.l.b16 %v181
    %v218 = vunpack.c.l.b16 %v182
    %v219 = vunpack.c.l.b16 %v183
    %v220 = vunpack.c.l.b16 %v184
    %v221 = vunpack.c.l.b16 %v185
    %v222 = vpack.c.b16 %v207, %v206
    %v223 = vpack.c.b16 %v209, %v208
    %v224 = vpack.c.b16 %v211, %v210
    %v225 = vpack.c.b16 %v213, %v212
    %v226 = vpack.c.b16 %v215, %v214
    %v227 = vpack.c.b16 %v217, %v216
    %v228 = vpack.c.b16 %v219, %v218
    %v229 = vpack.c.b16 %v221, %v220
    %238 = vmatprep.subr.bf16.mxu0 0
    %239 = vmatpush1.bf16.msra.mxu0 %v229
    %240 = vmatprep.subr.bf16.mxu0 0
    %241 = vmatpush1.bf16.msra.mxu0 %v228
    %242 = vmatprep.subr.bf16.mxu0 0
    %243 = vmatpush1.bf16.msra.mxu0 %v227
    %244 = vmatprep.subr.bf16.mxu0 0
    %245 = vmatpush1.bf16.msra.mxu0 %v226
    %246 = vmatprep.subr.bf16.mxu0 0
    %247 = vmatpush1.bf16.msra.mxu0 %v225
    %248 = vmatprep.subr.bf16.mxu0 0
    %249 = vmatpush1.bf16.msra.mxu0 %v224
    %250 = vmatprep.subr.bf16.mxu0 0
    %251 = vmatpush1.bf16.msra.mxu0 %v223
    %252 = vmatprep.subr.bf16.mxu0 0
    %253 = vmatpush1.bf16.msra.mxu0 %v222
    %254 = vmatprep.subr.bf16.mxu0 0
    %255 = vmatpush2.bf16.msra.mxu0 0
    %256 = vmatprep.subr.bf16.mxu0 0
    %257 = vmatpush2.bf16.msra.mxu0 0
    %258 = vmatprep.subr.bf16.mxu0 0
    %259 = vmatpush2.bf16.msra.mxu0 0
    %260 = vmatprep.subr.bf16.mxu0 0
    %261 = vmatpush2.bf16.msra.mxu0 0
    %262 = vmatprep.subr.bf16.mxu0 0
    %263 = vmatpush2.bf16.msra.mxu0 0
    %264 = vmatprep.subr.bf16.mxu0 0
    %265 = vmatpush2.bf16.msra.mxu0 0
    %266 = vmatprep.subr.bf16.mxu0 0
    %267 = vmatpush2.bf16.msra.mxu0 0
    %268 = vmatprep.subr.bf16.mxu0 0
    %269 = vmatpush2.bf16.msra.mxu0 0
    %270 = vmatprep.mubr.bf16.mxu0 0
    %271 = vmatmul.mubr.bf16.gmra.mxu0 %v169
    %v272 = vpop.f32.mrf.mxu0
    %v273 = vadd.f32 %v189, %v272
    %v274 = vpop.f32.mrf.mxu0
    %v275 = vpop.f32.mrf.mxu0
    %v276 = vpop.f32.mrf.mxu0
    %277 = vdwg.mxu0
    %278 = vst [vmem:[#allocation8] sm:$0xff] %v273
    // Predicated region
    $region30: #{tpu_custom_call.1} parent=1 // pred_check
      _
    $region31: #{tpu_custom_call.1} parent=1 // pred_check_branch
      %280 = sbr.rel (0) target = $region33
    $region32: #{tpu_custom_call.1} parent=1 // pred_region
      %s282 = ssub.s32 128, 128
      %283 = vsyncadd [#allocation4], %s282
      %s285 = sshll.u32 [#allocation8], 4
      %s286 = int_to_ptr.vmem [resolvable:$true] %s285
      %288 = dma.vmem_to_hbm [thread:$0]  %s286, 128, %s4, [#allocation4]
    $region33: #{tpu_custom_call.1} parent=1 // pred_fallthru
      _
    // Predicated region
    $region34: #{tpu_custom_call.1} parent=1 // pred_check
      _
    $region35: #{tpu_custom_call.1} parent=1 // pred_check_branch
      %290 = sbr.rel (0) target = $region37
    $region36: #{tpu_custom_call.1} parent=1 // pred_region
      %291 = dma.done [#allocation4], 128
    $region37: #{tpu_custom_call.1} parent=1 // pred_fallthru
      _
    %292 = vsyncpa [#allocation3], 1
    %293 = vsyncpa [#allocation6], 1
    %294 = vsyncpa [#allocation4], 1

</llo_original>
